<compile_context>
chip_gen: v5e
topology: v5e:2x2
jax: 0.10.0
libtpu: 0.0.40
codegen_flags: <defaults>
</compile_context>

<pallas_src>
import jax
import jax.numpy as jnp
from jax.experimental import pallas as pl
from jax.experimental.pallas import tpu as pltpu


def _round_up(x, m):
    return ((x + m - 1) // m) * m


def _actor_kernel(ma_ref,
                  state_ref,
                  w1_ref, b1_ref,
                  w2_ref, b2_ref,
                  w3_ref, b3_ref,
                  out_ref):
    """Fused 3-layer MLP: bf16 matmuls on the MXU (f32 accum), f32 epilogues."""
    x = state_ref[...]                                   # already bf16

    # Layer 1: Linear + ReLU
    h1 = jnp.dot(x, w1_ref[...], preferred_element_type=jnp.float32)
    h1 = jnp.maximum(h1 + b1_ref[...], 0.0)              # b1 is [1, H1]

    # Layer 2: Linear + ReLU
    h2 = jnp.dot(h1.astype(jnp.bfloat16), w2_ref[...],
                 preferred_element_type=jnp.float32)
    h2 = jnp.maximum(h2 + b2_ref[...], 0.0)

    # Layer 3: Linear + tanh (EUP), scaled by max_action (SMEM scalar)
    h3 = jnp.dot(h2.astype(jnp.bfloat16), w3_ref[...],
                 preferred_element_type=jnp.float32)
    h3 = h3 + b3_ref[...]
    max_action = ma_ref[0, 0]
    out_ref[...] = (max_action * jnp.tanh(h3)).astype(out_ref.dtype)


def actor_forward(state, kparams, max_action, *,
                  batch_tile=512, single_block_max=1024):
    """state: [B, state_dim] f32.  kparams: prepared (padded, bf16) params.
    max_action: Python float or JAX scalar (passed to the kernel via SMEM)."""
    B, state_dim = state.shape
    act_dim = kparams["W3"].shape[1]

    # Granularity: one grid step for RL-sized batches; TM=512 tiles otherwise.
    if B <= single_block_max:
        tm = _round_up(max(B, 8), 8)
        n_tiles = 1
    else:
        tm = batch_tile
        n_tiles = pl.cdiv(B, tm)
    Bp = n_tiles * tm

    # Pre-cast the streamed input to bf16 in the wrapper (v5e HBM-bytes win).
    x = state.astype(jnp.bfloat16)
    if Bp != B:
        x = jnp.pad(x, ((0, Bp - B), (0, 0)))

    # max_action as a (1,1) SMEM scalar: no recompile per value, trace-safe.
    ma = jnp.asarray(max_action, jnp.float32).reshape(1, 1)

    # Weights / biases: full-array blocks, constant block index -> DMA'd once,
    # resident in VMEM across all grid steps (~0.3 MiB bf16 total).
    def resident(shape):
        return pl.BlockSpec(shape, lambda i: (0,) * len(shape))

    d0, d1 = kparams["W1"].shape
    d2 = kparams["W2"].shape[1]
    d3 = act_dim
    weight_bytes = sum(
        int(kparams[k].size) * kparams[k].dtype.itemsize
        for k in ("W1", "b1", "W2", "b2", "W3", "b3"))
    cost = pl.CostEstimate(
        flops=2 * Bp * (d0 * d1 + d1 * d2 + d2 * d3),
        transcendentals=Bp * d3,
        bytes_accessed=Bp * d0 * 2 + Bp * d3 * 4 + weight_bytes,
    )

    out = pl.pallas_call(
        _actor_kernel,
        out_shape=jax.ShapeDtypeStruct((Bp, act_dim), jnp.float32),
        grid=(n_tiles,),
        in_specs=[
            pl.BlockSpec(memory_space=pltpu.MemorySpace.SMEM),     # max_action
            pl.BlockSpec((tm, state_dim), lambda i: (i, 0)),       # state tile
            resident(kparams["W1"].shape), resident(kparams["b1"].shape),
            resident(kparams["W2"].shape), resident(kparams["b2"].shape),
            resident(kparams["W3"].shape), resident(kparams["b3"].shape),
        ],
        out_specs=pl.BlockSpec((tm, act_dim), lambda i: (i, 0)),
        compiler_params=pltpu.CompilerParams(
            # TODO(synk): on v7x use pltpu.CORE_PARALLEL (and keep grid >= 2)
            # to actually shard the batch axis across both TensorCores.
            dimension_semantics=("parallel",)),
        cost_estimate=cost,
    )(ma, x, kparams["W1"], kparams["b1"], kparams["W2"], kparams["b2"],
      kparams["W3"], kparams["b3"])

    return out[:B]


def init_actor_params(key, state_dim, action_dim, hidden_sizes=(400, 300)):
    """f32, unpadded params (PyTorch Linear-style U(-1/sqrt(fan_in), +) init),
    stored as [in, out] so the forward is x @ W + b."""
    dims = [state_dim, hidden_sizes[0], hidden_sizes[1], action_dim]
    params = {}
    for i in range(3):
        key, kw, kb = jax.random.split(key, 3)
        fan_in, fan_out = dims[i], dims[i + 1]
        bound = 1.0 / jnp.sqrt(jnp.float32(fan_in))
        params[f"W{i+1}"] = jax.random.uniform(
            kw, (fan_in, fan_out), jnp.float32, -bound, bound)
        params[f"b{i+1}"] = jax.random.uniform(
            kb, (fan_out,), jnp.float32, -bound, bound)
    return params


def prepare_actor_params(params):
    """One-time host-side prep: zero-pad hidden dims to lane multiples (128)
    and cast weights to bf16.  Numerically identity w.r.t. the f32 model."""
    kparams = {}
    in_pad = 0  # extra padded rows carried over from the previous layer
    for i in range(1, 4):
        W = params[f"W{i}"]
        b = params[f"b{i}"]
        fan_in, fan_out = W.shape
        # Pad the output (lane) dim of hidden layers; keep the final action
        # dim as-is (block_shape == full array dim is always legal).
        out_pad = _round_up(fan_out, 128) - fan_out if i < 3 else 0
        Wp = jnp.pad(W, ((0, in_pad), (0, out_pad)))
        bp = jnp.pad(b, ((0, out_pad),)).reshape(1, fan_out + out_pad)
        kparams[f"W{i}"] = Wp.astype(jnp.bfloat16)
        kparams[f"b{i}"] = bp.astype(jnp.float32)
        in_pad = out_pad
    return kparams


def actor_forward_ref(state, params, max_action):
    """Pure-JAX f32 reference for correctness checking."""
    a = jnp.maximum(state @ params["W1"] + params["b1"], 0.0)
    a = jnp.maximum(a @ params["W2"] + params["b2"], 0.0)
    return max_action * jnp.tanh(a @ params["W3"] + params["b3"])


if __name__ == "__main__":
    key = jax.random.PRNGKey(0)
    state_dim, action_dim, max_action = 32, 8, 2.0

    kp, kx1, kx2 = jax.random.split(key, 3)
    params = init_actor_params(kp, state_dim, action_dim, hidden_sizes=(400, 300))
    kparams = prepare_actor_params(params)

    # Small-batch path: single grid step, sublane-rounded block.
    state_small = jax.random.normal(kx1, (8, state_dim), jnp.float32)
    out_small = jax.block_until_ready(
        actor_forward(state_small, kparams, max_action))
    ref_small = actor_forward_ref(state_small, params, max_action)
    assert out_small.shape == (8, action_dim)
    assert jnp.allclose(out_small, ref_small, atol=5e-2, rtol=5e-2), \
        "small-batch mismatch vs JAX reference"

    # RL-sized batch: still a single grid step (default single_block_max).
    state_big = jax.random.normal(kx2, (200, state_dim), jnp.float32)
    out_big = jax.block_until_ready(
        actor_forward(state_big, kparams, max_action))
    ref_big = actor_forward_ref(state_big, params, max_action)
    assert out_big.shape == (200, action_dim)
    assert jnp.allclose(out_big, ref_big, atol=5e-2, rtol=5e-2), \
        "single-block mismatch vs JAX reference"

    # Force the tiled path (ragged batch padded, >1 grid step) to keep it
    # exercised at small shapes.
    out_tiled = jax.block_until_ready(
        actor_forward(state_big, kparams, max_action,
                      batch_tile=128, single_block_max=64))
    assert out_tiled.shape == (200, action_dim)
    assert jnp.allclose(out_tiled, ref_big, atol=5e-2, rtol=5e-2), \
        "tiled-batch mismatch vs JAX reference"

    print("KERNEL_OK")
</pallas_src>

<mosaic_0001>
module attributes {stable_mosaic.version = 11 : i64} {
  func.func @_actor_kernel(%arg0: i32, %arg1: memref<1x1xf32, #tpu.memory_space<smem>>, %arg2: memref<8x32xbf16, #tpu.memory_space<vmem>>, %arg3: memref<32x512xbf16, #tpu.memory_space<vmem>>, %arg4: memref<1x512xf32, #tpu.memory_space<vmem>>, %arg5: memref<512x384xbf16, #tpu.memory_space<vmem>>, %arg6: memref<1x384xf32, #tpu.memory_space<vmem>>, %arg7: memref<384x8xbf16, #tpu.memory_space<vmem>>, %arg8: memref<1x8xf32, #tpu.memory_space<vmem>>, %arg9: memref<8x8xf32, #tpu.memory_space<vmem>>) attributes {dimension_semantics = [#tpu.dimension_semantics<parallel>], iteration_bounds = array<i64: 1>, scalar_prefetch = 0 : i64, scratch_operands = 0 : i64, tpu.core_type = #tpu.core_type<tc>, window_params = [{transform_indices = @transform_0, window_bounds = array<i64: 1, 1>}, {transform_indices = @transform_1, window_bounds = array<i64: 8, 32>}, {pipeline_mode = #tpu.pipeline_mode<synchronous>, transform_indices = @transform_2, window_bounds = array<i64: 32, 512>}, {pipeline_mode = #tpu.pipeline_mode<synchronous>, transform_indices = @transform_3, window_bounds = array<i64: 1, 512>}, {pipeline_mode = #tpu.pipeline_mode<synchronous>, transform_indices = @transform_4, window_bounds = array<i64: 512, 384>}, {pipeline_mode = #tpu.pipeline_mode<synchronous>, transform_indices = @transform_5, window_bounds = array<i64: 1, 384>}, {pipeline_mode = #tpu.pipeline_mode<synchronous>, transform_indices = @transform_6, window_bounds = array<i64: 384, 8>}, {pipeline_mode = #tpu.pipeline_mode<synchronous>, transform_indices = @transform_7, window_bounds = array<i64: 1, 8>}, {transform_indices = @transform_8, window_bounds = array<i64: 8, 8>}]} {
    %c0 = arith.constant 0 : index
    %c0_0 = arith.constant 0 : index
    %0 = vector.load %arg2[%c0, %c0_0] : memref<8x32xbf16, #tpu.memory_space<vmem>>, vector<8x32xbf16>
    %c0_1 = arith.constant 0 : index
    %c0_2 = arith.constant 0 : index
    %1 = vector.load %arg3[%c0_1, %c0_2] : memref<32x512xbf16, #tpu.memory_space<vmem>>, vector<32x512xbf16>
    %cst = arith.constant dense<0.000000e+00> : vector<8x512xf32>
    %2 = tpu.matmul %0, %1, %cst {dimension_numbers = #tpu.dot_dimension_numbers<[1], [0], [0], [1], [0, 0, 1, 1], [], []>} : vector<8x32xbf16>, vector<32x512xbf16>, vector<8x512xf32> -> vector<8x512xf32>
    %c0_3 = arith.constant 0 : index
    %c0_4 = arith.constant 0 : index
    %3 = vector.load %arg4[%c0_3, %c0_4] : memref<1x512xf32, #tpu.memory_space<vmem>>, vector<1x512xf32>
    %4 = vector.broadcast %3 : vector<1x512xf32> to vector<8x512xf32>
    %5 = arith.addf %2, %4 : vector<8x512xf32>
    %cst_5 = arith.constant 0.000000e+00 : f32
    %6 = vector.broadcast %cst_5 : f32 to vector<8x512xf32>
    %7 = arith.maximumf %5, %6 : vector<8x512xf32>
    %8 = arith.truncf %7 : vector<8x512xf32> to vector<8x512xbf16>
    %c0_6 = arith.constant 0 : index
    %c0_7 = arith.constant 0 : index
    %9 = vector.load %arg5[%c0_6, %c0_7] : memref<512x384xbf16, #tpu.memory_space<vmem>>, vector<512x384xbf16>
    %cst_8 = arith.constant dense<0.000000e+00> : vector<8x384xf32>
    %10 = tpu.matmul %8, %9, %cst_8 {dimension_numbers = #tpu.dot_dimension_numbers<[1], [0], [0], [1], [0, 0, 1, 1], [], []>} : vector<8x512xbf16>, vector<512x384xbf16>, vector<8x384xf32> -> vector<8x384xf32>
    %c0_9 = arith.constant 0 : index
    %c0_10 = arith.constant 0 : index
    %11 = vector.load %arg6[%c0_9, %c0_10] : memref<1x384xf32, #tpu.memory_space<vmem>>, vector<1x384xf32>
    %12 = vector.broadcast %11 : vector<1x384xf32> to vector<8x384xf32>
    %13 = arith.addf %10, %12 : vector<8x384xf32>
    %cst_11 = arith.constant 0.000000e+00 : f32
    %14 = vector.broadcast %cst_11 : f32 to vector<8x384xf32>
    %15 = arith.maximumf %13, %14 : vector<8x384xf32>
    %16 = arith.truncf %15 : vector<8x384xf32> to vector<8x384xbf16>
    %c0_12 = arith.constant 0 : index
    %c0_13 = arith.constant 0 : index
    %17 = vector.load %arg7[%c0_12, %c0_13] : memref<384x8xbf16, #tpu.memory_space<vmem>>, vector<384x8xbf16>
    %cst_14 = arith.constant dense<0.000000e+00> : vector<8x8xf32>
    %18 = tpu.matmul %16, %17, %cst_14 {dimension_numbers = #tpu.dot_dimension_numbers<[1], [0], [0], [1], [0, 0, 1, 1], [], []>} : vector<8x384xbf16>, vector<384x8xbf16>, vector<8x8xf32> -> vector<8x8xf32>
    %c0_15 = arith.constant 0 : index
    %c0_16 = arith.constant 0 : index
    %19 = vector.load %arg8[%c0_15, %c0_16] : memref<1x8xf32, #tpu.memory_space<vmem>>, vector<1x8xf32>
    %20 = vector.broadcast %19 : vector<1x8xf32> to vector<8x8xf32>
    %21 = arith.addf %18, %20 : vector<8x8xf32>
    %c0_17 = arith.constant 0 : index
    %c0_18 = arith.constant 0 : index
    %22 = memref.load %arg1[%c0_17, %c0_18] : memref<1x1xf32, #tpu.memory_space<smem>>
    %23 = math.tanh %21 : vector<8x8xf32>
    %24 = vector.broadcast %22 : f32 to vector<8x8xf32>
    %25 = arith.mulf %24, %23 : vector<8x8xf32>
    %c0_19 = arith.constant 0 : index
    %c0_20 = arith.constant 0 : index
    %26 = vector.load %arg9[%c0_19, %c0_20] : memref<8x8xf32, #tpu.memory_space<vmem>>, vector<8x8xf32>
    tpu.vector_store %arg9[%c0_19, %c0_20], %25 {strides = array<i32>} : memref<8x8xf32, #tpu.memory_space<vmem>>, vector<8x8xf32>,
    return
  }
  func.func @transform_0(%arg0: i32) -> (i32, i32) {
    %c0_i32 = arith.constant 0 : i32
    %c0_i32_0 = arith.constant 0 : i32
    %c0_i32_1 = arith.constant 0 : i32
    return %c0_i32, %c0_i32_0 : i32, i32
  }
  func.func @transform_1(%arg0: i32) -> (i32, i32) {
    %c0_i32 = arith.constant 0 : i32
    %c0_i32_0 = arith.constant 0 : i32
    return %arg0, %c0_i32 : i32, i32
  }
  func.func @transform_2(%arg0: i32) -> (i32, i32) {
    %c0_i32 = arith.constant 0 : i32
    %c0_i32_0 = arith.constant 0 : i32
    %c0_i32_1 = arith.constant 0 : i32
    return %c0_i32, %c0_i32_0 : i32, i32
  }
  func.func @transform_3(%arg0: i32) -> (i32, i32) {
    %c0_i32 = arith.constant 0 : i32
    %c0_i32_0 = arith.constant 0 : i32
    %c0_i32_1 = arith.constant 0 : i32
    return %c0_i32, %c0_i32_0 : i32, i32
  }
  func.func @transform_4(%arg0: i32) -> (i32, i32) {
    %c0_i32 = arith.constant 0 : i32
    %c0_i32_0 = arith.constant 0 : i32
    %c0_i32_1 = arith.constant 0 : i32
    return %c0_i32, %c0_i32_0 : i32, i32
  }
  func.func @transform_5(%arg0: i32) -> (i32, i32) {
    %c0_i32 = arith.constant 0 : i32
    %c0_i32_0 = arith.constant 0 : i32
    %c0_i32_1 = arith.constant 0 : i32
    return %c0_i32, %c0_i32_0 : i32, i32
  }
  func.func @transform_6(%arg0: i32) -> (i32, i32) {
    %c0_i32 = arith.constant 0 : i32
    %c0_i32_0 = arith.constant 0 : i32
    %c0_i32_1 = arith.constant 0 : i32
    return %c0_i32, %c0_i32_0 : i32, i32
  }
  func.func @transform_7(%arg0: i32) -> (i32, i32) {
    %c0_i32 = arith.constant 0 : i32
    %c0_i32_0 = arith.constant 0 : i32
    %c0_i32_1 = arith.constant 0 : i32
    return %c0_i32, %c0_i32_0 : i32, i32
  }
  func.func @transform_8(%arg0: i32) -> (i32, i32) {
    %c0_i32 = arith.constant 0 : i32
    %c0_i32_0 = arith.constant 0 : i32
    return %arg0, %c0_i32 : i32, i32
  }
}

</mosaic_0001>

<llo_original>
// kernel: tpu_custom_call.1
$region0: #{tpu_custom_call.1}
  #allocation0 [shape = 'u32[]', space=smem, size = 0x4, offset = 0x4, fixed_abs, tag = 'smem constant byte address 0x4 - core index']
  #allocation1 [shape = 'u32[72,128]{1,0:T(1,128)}', space=vmem, size = 0x9000, scoped, tag = 'internal scratch']
  #allocation2 [shape = 'f32[1,1]{1,0:T(1,128)S(6)}', space=smem, size = 0x200, scoped, tag = 'scoped memory for tpu_custom_call.1']
  %s0 = inlined_call_operand.<no memory space> [shape: f32[1,1], index: 0, kind: input, shape index: {}]
  %s1 = inlined_call_operand.vmem [shape: bf16[8,32], index: 1, kind: input, shape index: {}]
  %s2 = inlined_call_operand.vmem [shape: bf16[32,512], index: 2, kind: input, shape index: {}]
  %s3 = inlined_call_operand.vmem [shape: f32[1,512], index: 3, kind: input, shape index: {}]
  %s4 = inlined_call_operand.hbm [shape: bf16[512,384], index: 4, kind: input, shape index: {}]
  %s5 = inlined_call_operand.vmem [shape: f32[1,384], index: 5, kind: input, shape index: {}]
  %s6 = inlined_call_operand.vmem [shape: bf16[384,8], index: 6, kind: input, shape index: {}]
  %s7 = inlined_call_operand.vmem [shape: f32[1,8], index: 7, kind: input, shape index: {}]
  %s8 = inlined_call_operand.hbm [shape: f32[8,8], index: 8, kind: output, shape index: {}]
  %s9 = sld [smem:[#allocation0]]
  $region46: #{tpu_custom_call.1} parent=0
    _
  %s11 = ssub.s32 1, %s9
  %s12 = scalar_select 0, %s11, %s9
  %13 = sst [smem:[#allocation2]] %s0
  $region1: #{tpu_custom_call.1} parent=0
    #allocation3 [shape = 'u8[393216]{0}', space=vmem, size = 0x60000, scoped, tag = 'input window, operand 4, single buffered']
    #allocation4 [shape = 's32[1]{0}', space=sflag, size = 0x4, scoped, tag = 'scoped memory for tpu_custom_call.1']
    #allocation5 [shape = 's32[1]{0}', space=sflag, size = 0x4, scoped, tag = 'scoped memory for tpu_custom_call.1']
    #allocation6 [shape = 'u8[4096]{0}', space=vmem, size = 0x1000, scoped, tag = 'output window, operand 0, single buffered']
    %14 = vsyncpa [#allocation4], 0
    %15 = vsyncpa [#allocation5], 0
    // Predicated region
    $region2: #{tpu_custom_call.1} parent=1 // pred_check
      _
    $region3: #{tpu_custom_call.1} parent=1 // pred_check_branch
      %17 = sbr.rel (0) target = $region5
    $region4: #{tpu_custom_call.1} parent=1 // pred_region
      _
    $region5: #{tpu_custom_call.1} parent=1 // pred_fallthru
      _
    // Predicated region
    $region6: #{tpu_custom_call.1} parent=1 // pred_check
      _
    $region7: #{tpu_custom_call.1} parent=1 // pred_check_branch
      %19 = sbr.rel (0) target = $region9
    $region8: #{tpu_custom_call.1} parent=1 // pred_region
      _
    $region9: #{tpu_custom_call.1} parent=1 // pred_fallthru
      _
    // Predicated region
    $region10: #{tpu_custom_call.1} parent=1 // pred_check
      _
    $region11: #{tpu_custom_call.1} parent=1 // pred_check_branch
      %21 = sbr.rel (0) target = $region13
    $region12: #{tpu_custom_call.1} parent=1 // pred_region
      _
    $region13: #{tpu_custom_call.1} parent=1 // pred_fallthru
      _
    // Predicated region
    $region14: #{tpu_custom_call.1} parent=1 // pred_check
      _
    $region15: #{tpu_custom_call.1} parent=1 // pred_check_branch
      %23 = sbr.rel (0) target = $region17
    $region16: #{tpu_custom_call.1} parent=1 // pred_region
      _
    $region17: #{tpu_custom_call.1} parent=1 // pred_fallthru
      _
    // Predicated region
    $region18: #{tpu_custom_call.1} parent=1 // pred_check
      _
    $region19: #{tpu_custom_call.1} parent=1 // pred_check_branch
      %25 = sbr.rel (0) target = $region21
    $region20: #{tpu_custom_call.1} parent=1 // pred_region
      %27 = vsyncadd [#allocation4], 0
      %s28 = sshll.u32 %s4, 4
      %s29 = int_to_ptr.hbm [resolvable:$true] %s28
      %s30 = sshll.u32 [#allocation3], 4
      %s31 = int_to_ptr.vmem [resolvable:$true] %s30
      %36 = dma.hbm_to_vmem [thread:$0]  %s29, 12288, %s31, [#allocation4], 192, 192, 12
    $region21: #{tpu_custom_call.1} parent=1 // pred_fallthru
      _
    // Predicated region
    $region22: #{tpu_custom_call.1} parent=1 // pred_check
      _
    $region23: #{tpu_custom_call.1} parent=1 // pred_check_branch
      %38 = sbr.rel (0) target = $region25
    $region24: #{tpu_custom_call.1} parent=1 // pred_region
      _
    $region25: #{tpu_custom_call.1} parent=1 // pred_fallthru
      _
    // Predicated region
    $region26: #{tpu_custom_call.1} parent=1 // pred_check
      _
    $region27: #{tpu_custom_call.1} parent=1 // pred_check_branch
      %40 = sbr.rel (0) target = $region29
    $region28: #{tpu_custom_call.1} parent=1 // pred_region
      _
    $region29: #{tpu_custom_call.1} parent=1 // pred_fallthru
      _
    // Predicated region
    $region30: #{tpu_custom_call.1} parent=1 // pred_check
      _
    $region31: #{tpu_custom_call.1} parent=1 // pred_check_branch
      %42 = sbr.rel (0) target = $region33
    $region32: #{tpu_custom_call.1} parent=1 // pred_region
      _
    $region33: #{tpu_custom_call.1} parent=1 // pred_fallthru
      _
    // Predicated region
    $region34: #{tpu_custom_call.1} parent=1 // pred_check
      _
    $region35: #{tpu_custom_call.1} parent=1 // pred_check_branch
      %44 = sbr.rel (0) target = $region37
    $region36: #{tpu_custom_call.1} parent=1 // pred_region
      %46 = dma.done [#allocation4], 12288
    $region37: #{tpu_custom_call.1} parent=1 // pred_fallthru
      _
    %v48 = vld [vmem:[%s1] sm:$0xf]
    %v49 = vld [vmem:[%s2] sm:$0xff]
    %v50 = vld [vmem:[%s2 + $0x8] sm:$0xff]
    %v51 = vld [vmem:[%s2 + $0x10] sm:$0xff]
    %v52 = vld [vmem:[%s2 + $0x18] sm:$0xff]
    %v53 = vld [vmem:[%s2 + $0x20] sm:$0xff]
    %v54 = vld [vmem:[%s2 + $0x28] sm:$0xff]
    %v55 = vld [vmem:[%s2 + $0x30] sm:$0xff]
    %v56 = vld [vmem:[%s2 + $0x38] sm:$0xff]
    %v57 = vld [vmem:[%s3] sm:$0xf]
    %v59 = vperm.slane %v57, 0
    %v60 = vperm.slane %v57, 1
    %v61 = vperm.slane %v57, 2
    %v62 = vperm.slane %v57, 3
    %v75 = vunpack.c.l.b16 %v49
    %v76 = vunpack.c.h.b16 %v49
    %v77 = vunpack.c.l.b16 %v50
    %v78 = vunpack.c.h.b16 %v50
    %v79 = vunpack.c.l.b16 %v51
    %v80 = vunpack.c.h.b16 %v51
    %v81 = vunpack.c.l.b16 %v52
    %v82 = vunpack.c.h.b16 %v52
    %v83 = vunpack.c.l.b16 %v53
    %v84 = vunpack.c.h.b16 %v53
    %v85 = vunpack.c.l.b16 %v54
    %v86 = vunpack.c.h.b16 %v54
    %v87 = vunpack.c.l.b16 %v55
    %v88 = vunpack.c.h.b16 %v55
    %v89 = vunpack.c.l.b16 %v56
    %v90 = vunpack.c.h.b16 %v56
    %v91 = vpack.c.b16 %v79, %v75
    %v92 = vpack.c.b16 %v80, %v76
    %v93 = vpack.c.b16 %v81, %v77
    %v94 = vpack.c.b16 %v82, %v78
    %v95 = vpack.c.b16 %v87, %v83
    %v96 = vpack.c.b16 %v88, %v84
    %v97 = vpack.c.b16 %v89, %v85
    %v98 = vpack.c.b16 %v90, %v86
    %vm107 = vcmask 261120
    %v109 = vsel %vm107, %v48, 0
    %111 = vmatpush.bf16.msra.mxu0 0
    %112 = vmatpush.bf16.msra.mxu0 0
    %113 = vmatpush.bf16.msra.mxu0 0
    %114 = vmatpush.bf16.msra.mxu0 0
    %115 = vmatpush.bf16.msra.mxu0 0
    %116 = vmatpush.bf16.msra.mxu0 0
    %117 = vmatpush.bf16.msra.mxu0 %v95
    %118 = vmatpush.bf16.msra.mxu0 %v91
    %119 = vmatmul.bf16.gmra.mxu0 %v109
    %v120 = vpop.f32.mrf.mxu0
    %v121 = vadd.f32 %v59, %v120
    %v122 = vpop.f32.mrf.mxu0
    %123 = vdwg.mxu0
    %124 = vmatpush.bf16.msra.mxu0 0
    %125 = vmatpush.bf16.msra.mxu0 0
    %126 = vmatpush.bf16.msra.mxu0 0
    %127 = vmatpush.bf16.msra.mxu0 0
    %128 = vmatpush.bf16.msra.mxu0 0
    %129 = vmatpush.bf16.msra.mxu0 0
    %130 = vmatpush.bf16.msra.mxu0 %v96
    %131 = vmatpush.bf16.msra.mxu0 %v92
    %132 = vmatmul.bf16.gmra.mxu0 %v109
    %v133 = vpop.f32.mrf.mxu0
    %v134 = vadd.f32 %v60, %v133
    %v135 = vpop.f32.mrf.mxu0
    %136 = vdwg.mxu0
    %137 = vmatpush.bf16.msra.mxu0 0
    %138 = vmatpush.bf16.msra.mxu0 0
    %139 = vmatpush.bf16.msra.mxu0 0
    %140 = vmatpush.bf16.msra.mxu0 0
    %141 = vmatpush.bf16.msra.mxu0 0
    %142 = vmatpush.bf16.msra.mxu0 0
    %143 = vmatpush.bf16.msra.mxu0 %v97
    %144 = vmatpush.bf16.msra.mxu0 %v93
    %145 = vmatmul.bf16.gmra.mxu0 %v109
    %v146 = vpop.f32.mrf.mxu0
    %v147 = vadd.f32 %v61, %v146
    %v148 = vpop.f32.mrf.mxu0
    %149 = vdwg.mxu0
    %150 = vmatpush.bf16.msra.mxu0 0
    %151 = vmatpush.bf16.msra.mxu0 0
    %152 = vmatpush.bf16.msra.mxu0 0
    %153 = vmatpush.bf16.msra.mxu0 0
    %154 = vmatpush.bf16.msra.mxu0 0
    %155 = vmatpush.bf16.msra.mxu0 0
    %156 = vmatpush.bf16.msra.mxu0 %v98
    %157 = vmatpush.bf16.msra.mxu0 %v94
    %158 = vmatmul.bf16.gmra.mxu0 %v109
    %v159 = vpop.f32.mrf.mxu0
    %v160 = vadd.f32 %v62, %v159
    %v161 = vpop.f32.mrf.mxu0
    %162 = vdwg.mxu0
    %v163 = vmax.f32 %v121, 0.0
    %v164 = vmax.f32 %v134, 0.0
    %v165 = vmax.f32 %v147, 0.0
    %v166 = vmax.f32 %v160, 0.0
    %v167 = vpack.c.bf16 %v163, %v163
    %v168 = vpack.c.bf16 %v164, %v164
    %v169 = vpack.c.bf16 %v165, %v165
    %v170 = vpack.c.bf16 %v166, %v166
    %v171 = vld [vmem:[#allocation3] sm:$0xff]
    %v172 = vld [vmem:[#allocation3 + $0x8] sm:$0xf]
    %v173 = vld [vmem:[#allocation3 + $0xc] sm:$0xff]
    %v174 = vld [vmem:[#allocation3 + $0x14] sm:$0xf]
    %v175 = vld [vmem:[#allocation3 + $0x18] sm:$0xff]
    %v176 = vld [vmem:[#allocation3 + $0x20] sm:$0xf]
    %v177 = vld [vmem:[#allocation3 + $0x24] sm:$0xff]
    %v178 = vld [vmem:[#allocation3 + $0x2c] sm:$0xf]
    %v179 = vld [vmem:[#allocation3 + $0x30] sm:$0xff]
    %v180 = vld [vmem:[#allocation3 + $0x38] sm:$0xf]
    %v181 = vld [vmem:[#allocation3 + $0x3c] sm:$0xff]
    %v182 = vld [vmem:[#allocation3 + $0x44] sm:$0xf]
    %v183 = vld [vmem:[#allocation3 + $0x48] sm:$0xff]
    %v184 = vld [vmem:[#allocation3 + $0x50] sm:$0xf]
    %v185 = vld [vmem:[#allocation3 + $0x54] sm:$0xff]
    %v186 = vld [vmem:[#allocation3 + $0x5c] sm:$0xf]
    %v187 = vld [vmem:[#allocation3 + $0x60] sm:$0xff]
    %v188 = vld [vmem:[#allocation3 + $0x68] sm:$0xf]
    %v189 = vld [vmem:[#allocation3 + $0x6c] sm:$0xff]
    %v190 = vld [vmem:[#allocation3 + $0x74] sm:$0xf]
    %v191 = vld [vmem:[#allocation3 + $0x78] sm:$0xff]
    %v192 = vld [vmem:[#allocation3 + $0x80] sm:$0xf]
    %v193 = vld [vmem:[#allocation3 + $0x84] sm:$0xff]
    %v194 = vld [vmem:[#allocation3 + $0x8c] sm:$0xf]
    %v195 = vld [vmem:[#allocation3 + $0x90] sm:$0xff]
    %v196 = vld [vmem:[#allocation3 + $0x98] sm:$0xf]
    %v197 = vld [vmem:[#allocation3 + $0x9c] sm:$0xff]
    %v198 = vld [vmem:[#allocation3 + $0xa4] sm:$0xf]
    %v199 = vld [vmem:[#allocation3 + $0xa8] sm:$0xff]
    %v200 = vld [vmem:[#allocation3 + $0xb0] sm:$0xf]
    %v201 = vld [vmem:[#allocation3 + $0xb4] sm:$0xff]
    %v202 = vld [vmem:[#allocation3 + $0xbc] sm:$0xf]
    %v203 = vld [vmem:[#allocation3 + $0xc0] sm:$0xff]
    %v204 = vld [vmem:[#allocation3 + $0xc8] sm:$0xf]
    %v205 = vld [vmem:[#allocation3 + $0xcc] sm:$0xff]
    %v206 = vld [vmem:[#allocation3 + $0xd4] sm:$0xf]
    %v207 = vld [vmem:[#allocation3 + $0xd8] sm:$0xff]
    %v208 = vld [vmem:[#allocation3 + $0xe0] sm:$0xf]
    %v209 = vld [vmem:[#allocation3 + $0xe4] sm:$0xff]
    %v210 = vld [vmem:[#allocation3 + $0xec] sm:$0xf]
    %v211 = vld [vmem:[#allocation3 + $0xf0] sm:$0xff]
    %v212 = vld [vmem:[#allocation3 + $0xf8] sm:$0xf]
    %v213 = vld [vmem:[#allocation3 + $0xfc] sm:$0xff]
    %v214 = vld [vmem:[#allocation3 + $0x104] sm:$0xf]
    %v215 = vld [vmem:[#allocation3 + $0x108] sm:$0xff]
    %v216 = vld [vmem:[#allocation3 + $0x110] sm:$0xf]
    %v217 = vld [vmem:[#allocation3 + $0x114] sm:$0xff]
    %v218 = vld [vmem:[#allocation3 + $0x11c] sm:$0xf]
    %v219 = vld [vmem:[#allocation3 + $0x120] sm:$0xff]
    %v220 = vld [vmem:[#allocation3 + $0x128] sm:$0xf]
    %v221 = vld [vmem:[#allocation3 + $0x12c] sm:$0xff]
    %v222 = vld [vmem:[#allocation3 + $0x134] sm:$0xf]
    %v223 = vld [vmem:[#allocation3 + $0x138] sm:$0xff]
    %v224 = vld [vmem:[#allocation3 + $0x140] sm:$0xf]
    %v225 = vld [vmem:[#allocation3 + $0x144] sm:$0xff]
    %v226 = vld [vmem:[#allocation3 + $0x14c] sm:$0xf]
    %v227 = vld [vmem:[#allocation3 + $0x150] sm:$0xff]
    %v228 = vld [vmem:[#allocation3 + $0x158] sm:$0xf]
    %v229 = vld [vmem:[#allocation3 + $0x15c] sm:$0xff]
    %v230 = vld [vmem:[#allocation3 + $0x164] sm:$0xf]
    %v231 = vld [vmem:[#allocation3 + $0x168] sm:$0xff]
    %v232 = vld [vmem:[#allocation3 + $0x170] sm:$0xf]
    %v233 = vld [vmem:[#allocation3 + $0x174] sm:$0xff]
    %v234 = vld [vmem:[#allocation3 + $0x17c] sm:$0xf]
    %v235 = vld [vmem:[#allocation3 + $0x180] sm:$0xff]
    %v236 = vld [vmem:[#allocation3 + $0x188] sm:$0xf]
    %v237 = vld [vmem:[#allocation3 + $0x18c] sm:$0xff]
    %v238 = vld [vmem:[#allocation3 + $0x194] sm:$0xf]
    %v239 = vld [vmem:[#allocation3 + $0x198] sm:$0xff]
    %v240 = vld [vmem:[#allocation3 + $0x1a0] sm:$0xf]
    %v241 = vld [vmem:[#allocation3 + $0x1a4] sm:$0xff]
    %v242 = vld [vmem:[#allocation3 + $0x1ac] sm:$0xf]
    %v243 = vld [vmem:[#allocation3 + $0x1b0] sm:$0xff]
    %v244 = vld [vmem:[#allocation3 + $0x1b8] sm:$0xf]
    %v245 = vld [vmem:[#allocation3 + $0x1bc] sm:$0xff]
    %v246 = vld [vmem:[#allocation3 + $0x1c4] sm:$0xf]
    %v247 = vld [vmem:[#allocation3 + $0x1c8] sm:$0xff]
    %v248 = vld [vmem:[#allocation3 + $0x1d0] sm:$0xf]
    %v249 = vld [vmem:[#allocation3 + $0x1d4] sm:$0xff]
    %v250 = vld [vmem:[#allocation3 + $0x1dc] sm:$0xf]
    %v251 = vld [vmem:[#allocation3 + $0x1e0] sm:$0xff]
    %v252 = vld [vmem:[#allocation3 + $0x1e8] sm:$0xf]
    %v253 = vld [vmem:[#allocation3 + $0x1ec] sm:$0xff]
    %v254 = vld [vmem:[#allocation3 + $0x1f4] sm:$0xf]
    %v255 = vld [vmem:[#allocation3 + $0x1f8] sm:$0xff]
    %v256 = vld [vmem:[#allocation3 + $0x200] sm:$0xf]
    %v257 = vld [vmem:[#allocation3 + $0x204] sm:$0xff]
    %v258 = vld [vmem:[#allocation3 + $0x20c] sm:$0xf]
    %v259 = vld [vmem:[#allocation3 + $0x210] sm:$0xff]
    %v260 = vld [vmem:[#allocation3 + $0x218] sm:$0xf]
    %v261 = vld [vmem:[#allocation3 + $0x21c] sm:$0xff]
    %v262 = vld [vmem:[#allocation3 + $0x224] sm:$0xf]
    %v263 = vld [vmem:[#allocation3 + $0x228] sm:$0xff]
    %v264 = vld [vmem:[#allocation3 + $0x230] sm:$0xf]
    %v265 = vld [vmem:[#allocation3 + $0x234] sm:$0xff]
    %v266 = vld [vmem:[#allocation3 + $0x23c] sm:$0xf]
    %v267 = vld [vmem:[#allocation3 + $0x240] sm:$0xff]
    %v268 = vld [vmem:[#allocation3 + $0x248] sm:$0xf]
    %v269 = vld [vmem:[#allocation3 + $0x24c] sm:$0xff]
    %v270 = vld [vmem:[#allocation3 + $0x254] sm:$0xf]
    %v271 = vld [vmem:[#allocation3 + $0x258] sm:$0xff]
    %v272 = vld [vmem:[#allocation3 + $0x260] sm:$0xf]
    %v273 = vld [vmem:[#allocation3 + $0x264] sm:$0xff]
    %v274 = vld [vmem:[#allocation3 + $0x26c] sm:$0xf]
    %v275 = vld [vmem:[#allocation3 + $0x270] sm:$0xff]
    %v276 = vld [vmem:[#allocation3 + $0x278] sm:$0xf]
    %v277 = vld [vmem:[#allocation3 + $0x27c] sm:$0xff]
    %v278 = vld [vmem:[#allocation3 + $0x284] sm:$0xf]
    %v279 = vld [vmem:[#allocation3 + $0x288] sm:$0xff]
    %v280 = vld [vmem:[#allocation3 + $0x290] sm:$0xf]
    %v281 = vld [vmem:[#allocation3 + $0x294] sm:$0xff]
    %v282 = vld [vmem:[#allocation3 + $0x29c] sm:$0xf]
    %v283 = vld [vmem:[#allocation3 + $0x2a0] sm:$0xff]
    %v284 = vld [vmem:[#allocation3 + $0x2a8] sm:$0xf]
    %v285 = vld [vmem:[#allocation3 + $0x2ac] sm:$0xff]
    %v286 = vld [vmem:[#allocation3 + $0x2b4] sm:$0xf]
    %v287 = vld [vmem:[#allocation3 + $0x2b8] sm:$0xff]
    %v288 = vld [vmem:[#allocation3 + $0x2c0] sm:$0xf]
    %v289 = vld [vmem:[#allocation3 + $0x2c4] sm:$0xff]
    %v290 = vld [vmem:[#allocation3 + $0x2cc] sm:$0xf]
    %v291 = vld [vmem:[#allocation3 + $0x2d0] sm:$0xff]
    %v292 = vld [vmem:[#allocation3 + $0x2d8] sm:$0xf]
    %v293 = vld [vmem:[#allocation3 + $0x2dc] sm:$0xff]
    %v294 = vld [vmem:[#allocation3 + $0x2e4] sm:$0xf]
    %v295 = vld [vmem:[#allocation3 + $0x2e8] sm:$0xff]
    %v296 = vld [vmem:[#allocation3 + $0x2f0] sm:$0xf]
    %v297 = vld [vmem:[#allocation3 + $0x2f4] sm:$0xff]
    %v298 = vld [vmem:[#allocation3 + $0x2fc] sm:$0xf]
    %v299 = vld [vmem:[%s5] sm:$0x7]
    %v301 = vperm.slane %v299, 0
    %v302 = vperm.slane %v299, 1
    %v303 = vperm.slane %v299, 2
    %v435 = vunpack.c.l.b16 %v171
    %v436 = vunpack.c.h.b16 %v171
    %v437 = vunpack.c.l.b16 %v172
    %v438 = vunpack.c.l.b16 %v173
    %v439 = vunpack.c.h.b16 %v173
    %v440 = vunpack.c.l.b16 %v174
    %v441 = vunpack.c.l.b16 %v175
    %v442 = vunpack.c.h.b16 %v175
    %v443 = vunpack.c.l.b16 %v176
    %v444 = vunpack.c.l.b16 %v177
    %v445 = vunpack.c.h.b16 %v177
    %v446 = vunpack.c.l.b16 %v178
    %v447 = vunpack.c.l.b16 %v179
    %v448 = vunpack.c.h.b16 %v179
    %v449 = vunpack.c.l.b16 %v180
    %v450 = vunpack.c.l.b16 %v181
    %v451 = vunpack.c.h.b16 %v181
    %v452 = vunpack.c.l.b16 %v182
    %v453 = vunpack.c.l.b16 %v183
    %v454 = vunpack.c.h.b16 %v183
    %v455 = vunpack.c.l.b16 %v184
    %v456 = vunpack.c.l.b16 %v185
    %v457 = vunpack.c.h.b16 %v185
    %v458 = vunpack.c.l.b16 %v186
    %v459 = vunpack.c.l.b16 %v187
    %v460 = vunpack.c.h.b16 %v187
    %v461 = vunpack.c.l.b16 %v188
    %v462 = vunpack.c.l.b16 %v189
    %v463 = vunpack.c.h.b16 %v189
    %v464 = vunpack.c.l.b16 %v190
    %v465 = vunpack.c.l.b16 %v191
    %v466 = vunpack.c.h.b16 %v191
    %v467 = vunpack.c.l.b16 %v192
    %v468 = vunpack.c.l.b16 %v193
    %v469 = vunpack.c.h.b16 %v193
    %v470 = vunpack.c.l.b16 %v194
    %v471 = vunpack.c.l.b16 %v195
    %v472 = vunpack.c.h.b16 %v195
    %v473 = vunpack.c.l.b16 %v196
    %v474 = vunpack.c.l.b16 %v197
    %v475 = vunpack.c.h.b16 %v197
    %v476 = vunpack.c.l.b16 %v198
    %v477 = vunpack.c.l.b16 %v199
    %v478 = vunpack.c.h.b16 %v199
    %v479 = vunpack.c.l.b16 %v200
    %v480 = vunpack.c.l.b16 %v201
    %v481 = vunpack.c.h.b16 %v201
    %v482 = vunpack.c.l.b16 %v202
    %v483 = vunpack.c.l.b16 %v203
    %v484 = vunpack.c.h.b16 %v203
    %v485 = vunpack.c.l.b16 %v204
    %v486 = vunpack.c.l.b16 %v205
    %v487 = vunpack.c.h.b16 %v205
    %v488 = vunpack.c.l.b16 %v206
    %v489 = vunpack.c.l.b16 %v207
    %v490 = vunpack.c.h.b16 %v207
    %v491 = vunpack.c.l.b16 %v208
    %v492 = vunpack.c.l.b16 %v209
    %v493 = vunpack.c.h.b16 %v209
    %v494 = vunpack.c.l.b16 %v210
    %v495 = vunpack.c.l.b16 %v211
    %v496 = vunpack.c.h.b16 %v211
    %v497 = vunpack.c.l.b16 %v212
    %v498 = vunpack.c.l.b16 %v213
    %v499 = vunpack.c.h.b16 %v213
    %v500 = vunpack.c.l.b16 %v214
    %v501 = vunpack.c.l.b16 %v215
    %v502 = vunpack.c.h.b16 %v215
    %v503 = vunpack.c.l.b16 %v216
    %v504 = vunpack.c.l.b16 %v217
    %v505 = vunpack.c.h.b16 %v217
    %v506 = vunpack.c.l.b16 %v218
    %v507 = vunpack.c.l.b16 %v219
    %v508 = vunpack.c.h.b16 %v219
    %v509 = vunpack.c.l.b16 %v220
    %v510 = vunpack.c.l.b16 %v221
    %v511 = vunpack.c.h.b16 %v221
    %v512 = vunpack.c.l.b16 %v222
    %v513 = vunpack.c.l.b16 %v223
    %v514 = vunpack.c.h.b16 %v223
    %v515 = vunpack.c.l.b16 %v224
    %v516 = vunpack.c.l.b16 %v225
    %v517 = vunpack.c.h.b16 %v225
    %v518 = vunpack.c.l.b16 %v226
    %v519 = vunpack.c.l.b16 %v227
    %v520 = vunpack.c.h.b16 %v227
    %v521 = vunpack.c.l.b16 %v228
    %v522 = vunpack.c.l.b16 %v229
    %v523 = vunpack.c.h.b16 %v229
    %v524 = vunpack.c.l.b16 %v230
    %v525 = vunpack.c.l.b16 %v231
    %v526 = vunpack.c.h.b16 %v231
    %v527 = vunpack.c.l.b16 %v232
    %v528 = vunpack.c.l.b16 %v233
    %v529 = vunpack.c.h.b16 %v233
    %v530 = vunpack.c.l.b16 %v234
    %v531 = vunpack.c.l.b16 %v235
    %v532 = vunpack.c.h.b16 %v235
    %v533 = vunpack.c.l.b16 %v236
    %v534 = vunpack.c.l.b16 %v237
    %v535 = vunpack.c.h.b16 %v237
    %v536 = vunpack.c.l.b16 %v238
    %v537 = vunpack.c.l.b16 %v239
    %v538 = vunpack.c.h.b16 %v239
    %v539 = vunpack.c.l.b16 %v240
    %v540 = vunpack.c.l.b16 %v241
    %v541 = vunpack.c.h.b16 %v241
    %v542 = vunpack.c.l.b16 %v242
    %v543 = vunpack.c.l.b16 %v243
    %v544 = vunpack.c.h.b16 %v243
    %v545 = vunpack.c.l.b16 %v244
    %v546 = vunpack.c.l.b16 %v245
    %v547 = vunpack.c.h.b16 %v245
    %v548 = vunpack.c.l.b16 %v246
    %v549 = vunpack.c.l.b16 %v247
    %v550 = vunpack.c.h.b16 %v247
    %v551 = vunpack.c.l.b16 %v248
    %v552 = vunpack.c.l.b16 %v249
    %v553 = vunpack.c.h.b16 %v249
    %v554 = vunpack.c.l.b16 %v250
    %v555 = vunpack.c.l.b16 %v251
    %v556 = vunpack.c.h.b16 %v251
    %v557 = vunpack.c.l.b16 %v252
    %v558 = vunpack.c.l.b16 %v253
    %v559 = vunpack.c.h.b16 %v253
    %v560 = vunpack.c.l.b16 %v254
    %v561 = vunpack.c.l.b16 %v255
    %v562 = vunpack.c.h.b16 %v255
    %v563 = vunpack.c.l.b16 %v256
    %v564 = vunpack.c.l.b16 %v257
    %v565 = vunpack.c.h.b16 %v257
    %v566 = vunpack.c.l.b16 %v258
    %v567 = vunpack.c.l.b16 %v259
    %v568 = vunpack.c.h.b16 %v259
    %v569 = vunpack.c.l.b16 %v260
    %v570 = vunpack.c.l.b16 %v261
    %v571 = vunpack.c.h.b16 %v261
    %v572 = vunpack.c.l.b16 %v262
    %v573 = vunpack.c.l.b16 %v263
    %v574 = vunpack.c.h.b16 %v263
    %v575 = vunpack.c.l.b16 %v264
    %v576 = vunpack.c.l.b16 %v265
    %v577 = vunpack.c.h.b16 %v265
    %v578 = vunpack.c.l.b16 %v266
    %v579 = vunpack.c.l.b16 %v267
    %v580 = vunpack.c.h.b16 %v267
    %v581 = vunpack.c.l.b16 %v268
    %v582 = vunpack.c.l.b16 %v269
    %v583 = vunpack.c.h.b16 %v269
    %v584 = vunpack.c.l.b16 %v270
    %v585 = vunpack.c.l.b16 %v271
    %v586 = vunpack.c.h.b16 %v271
    %v587 = vunpack.c.l.b16 %v272
    %v588 = vunpack.c.l.b16 %v273
    %v589 = vunpack.c.h.b16 %v273
    %v590 = vunpack.c.l.b16 %v274
    %v591 = vunpack.c.l.b16 %v275
    %v592 = vunpack.c.h.b16 %v275
    %v593 = vunpack.c.l.b16 %v276
    %v594 = vunpack.c.l.b16 %v277
    %v595 = vunpack.c.h.b16 %v277
    %v596 = vunpack.c.l.b16 %v278
    %v597 = vunpack.c.l.b16 %v279
    %v598 = vunpack.c.h.b16 %v279
    %v599 = vunpack.c.l.b16 %v280
    %v600 = vunpack.c.l.b16 %v281
    %v601 = vunpack.c.h.b16 %v281
    %v602 = vunpack.c.l.b16 %v282
    %v603 = vunpack.c.l.b16 %v283
    %v604 = vunpack.c.h.b16 %v283
    %v605 = vunpack.c.l.b16 %v284
    %v606 = vunpack.c.l.b16 %v285
    %v607 = vunpack.c.h.b16 %v285
    %v608 = vunpack.c.l.b16 %v286
    %v609 = vunpack.c.l.b16 %v287
    %v610 = vunpack.c.h.b16 %v287
    %v611 = vunpack.c.l.b16 %v288
    %v612 = vunpack.c.l.b16 %v289
    %v613 = vunpack.c.h.b16 %v289
    %v614 = vunpack.c.l.b16 %v290
    %v615 = vunpack.c.l.b16 %v291
    %v616 = vunpack.c.h.b16 %v291
    %v617 = vunpack.c.l.b16 %v292
    %v618 = vunpack.c.l.b16 %v293
    %v619 = vunpack.c.h.b16 %v293
    %v620 = vunpack.c.l.b16 %v294
    %v621 = vunpack.c.l.b16 %v295
    %v622 = vunpack.c.h.b16 %v295
    %v623 = vunpack.c.l.b16 %v296
    %v624 = vunpack.c.l.b16 %v297
    %v625 = vunpack.c.h.b16 %v297
    %v626 = vunpack.c.l.b16 %v298
    %v627 = vpack.c.b16 %v438, %v435
    %v628 = vpack.c.b16 %v439, %v436
    %v629 = vpack.c.b16 %v440, %v437
    %v630 = vpack.c.b16 %v444, %v441
    %v631 = vpack.c.b16 %v445, %v442
    %v632 = vpack.c.b16 %v446, %v443
    %v633 = vpack.c.b16 %v450, %v447
    %v634 = vpack.c.b16 %v451, %v448
    %v635 = vpack.c.b16 %v452, %v449
    %v636 = vpack.c.b16 %v456, %v453
    %v637 = vpack.c.b16 %v457, %v454
    %v638 = vpack.c.b16 %v458, %v455
    %v639 = vpack.c.b16 %v462, %v459
    %v640 = vpack.c.b16 %v463, %v460
    %v641 = vpack.c.b16 %v464, %v461
    %v642 = vpack.c.b16 %v468, %v465
    %v643 = vpack.c.b16 %v469, %v466
    %v644 = vpack.c.b16 %v470, %v467
    %v645 = vpack.c.b16 %v474, %v471
    %v646 = vpack.c.b16 %v475, %v472
    %v647 = vpack.c.b16 %v476, %v473
    %v648 = vpack.c.b16 %v480, %v477
    %v649 = vpack.c.b16 %v481, %v478
    %v650 = vpack.c.b16 %v482, %v479
    %v651 = vpack.c.b16 %v486, %v483
    %v652 = vpack.c.b16 %v487, %v484
    %v653 = vpack.c.b16 %v488, %v485
    %v654 = vpack.c.b16 %v492, %v489
    %v655 = vpack.c.b16 %v493, %v490
    %v656 = vpack.c.b16 %v494, %v491
    %v657 = vpack.c.b16 %v498, %v495
    %v658 = vpack.c.b16 %v499, %v496
    %v659 = vpack.c.b16 %v500, %v497
    %v660 = vpack.c.b16 %v504, %v501
    %v661 = vpack.c.b16 %v505, %v502
    %v662 = vpack.c.b16 %v506, %v503
    %v663 = vpack.c.b16 %v510, %v507
    %v664 = vpack.c.b16 %v511, %v508
    %v665 = vpack.c.b16 %v512, %v509
    %v666 = vpack.c.b16 %v516, %v513
    %v667 = vpack.c.b16 %v517, %v514
    %v668 = vpack.c.b16 %v518, %v515
    %v669 = vpack.c.b16 %v522, %v519
    %v670 = vpack.c.b16 %v523, %v520
    %v671 = vpack.c.b16 %v524, %v521
    %v672 = vpack.c.b16 %v528, %v525
    %v673 = vpack.c.b16 %v529, %v526
    %v674 = vpack.c.b16 %v530, %v527
    %v675 = vpack.c.b16 %v534, %v531
    %v676 = vpack.c.b16 %v535, %v532
    %v677 = vpack.c.b16 %v536, %v533
    %v678 = vpack.c.b16 %v540, %v537
    %v679 = vpack.c.b16 %v541, %v538
    %v680 = vpack.c.b16 %v542, %v539
    %v681 = vpack.c.b16 %v546, %v543
    %v682 = vpack.c.b16 %v547, %v544
    %v683 = vpack.c.b16 %v548, %v545
    %v684 = vpack.c.b16 %v552, %v549
    %v685 = vpack.c.b16 %v553, %v550
    %v686 = vpack.c.b16 %v554, %v551
    %v687 = vpack.c.b16 %v558, %v555
    %v688 = vpack.c.b16 %v559, %v556
    %v689 = vpack.c.b16 %v560, %v557
    %v690 = vpack.c.b16 %v564, %v561
    %v691 = vpack.c.b16 %v565, %v562
    %v692 = vpack.c.b16 %v566, %v563
    %v693 = vpack.c.b16 %v570, %v567
    %v694 = vpack.c.b16 %v571, %v568
    %v695 = vpack.c.b16 %v572, %v569
    %v696 = vpack.c.b16 %v576, %v573
    %v697 = vpack.c.b16 %v577, %v574
    %v698 = vpack.c.b16 %v578, %v575
    %v699 = vpack.c.b16 %v582, %v579
    %v700 = vpack.c.b16 %v583, %v580
    %v701 = vpack.c.b16 %v584, %v581
    %v702 = vpack.c.b16 %v588, %v585
    %v703 = vpack.c.b16 %v589, %v586
    %v704 = vpack.c.b16 %v590, %v587
    %v705 = vpack.c.b16 %v594, %v591
    %v706 = vpack.c.b16 %v595, %v592
    %v707 = vpack.c.b16 %v596, %v593
    %v708 = vpack.c.b16 %v600, %v597
    %v709 = vpack.c.b16 %v601, %v598
    %v710 = vpack.c.b16 %v602, %v599
    %v711 = vpack.c.b16 %v606, %v603
    %v712 = vpack.c.b16 %v607, %v604
    %v713 = vpack.c.b16 %v608, %v605
    %v714 = vpack.c.b16 %v612, %v609
    %v715 = vpack.c.b16 %v613, %v610
    %v716 = vpack.c.b16 %v614, %v611
    %v717 = vpack.c.b16 %v618, %v615
    %v718 = vpack.c.b16 %v619, %v616
    %v719 = vpack.c.b16 %v620, %v617
    %v720 = vpack.c.b16 %v624, %v621
    %v721 = vpack.c.b16 %v625, %v622
    %v722 = vpack.c.b16 %v626, %v623
    %819 = vmatpush.bf16.msra.mxu0 %v648
    %820 = vmatpush.bf16.msra.mxu0 %v645
    %821 = vmatpush.bf16.msra.mxu0 %v642
    %822 = vmatpush.bf16.msra.mxu0 %v639
    %823 = vmatpush.bf16.msra.mxu0 %v636
    %824 = vmatpush.bf16.msra.mxu0 %v633
    %825 = vmatpush.bf16.msra.mxu0 %v630
    %826 = vmatpush.bf16.msra.mxu0 %v627
    %827 = vmatmul.bf16.gmra.mxu0 %v167
    %v828 = vpop.f32.mrf.mxu0
    %v829 = vadd.f32 %v301, %v828
    %v830 = vpop.f32.mrf.mxu0
    %831 = vdwg.mxu0
    %832 = vmatpush.bf16.msra.mxu0 %v672
    %833 = vmatpush.bf16.msra.mxu0 %v669
    %834 = vmatpush.bf16.msra.mxu0 %v666
    %835 = vmatpush.bf16.msra.mxu0 %v663
    %836 = vmatpush.bf16.msra.mxu0 %v660
    %837 = vmatpush.bf16.msra.mxu0 %v657
    %838 = vmatpush.bf16.msra.mxu0 %v654
    %839 = vmatpush.bf16.msra.mxu0 %v651
    %840 = vmatmul.bf16.gmra.mxu0 %v168
    %v841 = vpop.f32.mrf.mxu0
    %v842 = vadd.f32 %v829, %v841
    %v843 = vpop.f32.mrf.mxu0
    %844 = vdwg.mxu0
    %845 = vmatpush.bf16.msra.mxu0 %v696
    %846 = vmatpush.bf16.msra.mxu0 %v693
    %847 = vmatpush.bf16.msra.mxu0 %v690
    %848 = vmatpush.bf16.msra.mxu0 %v687
    %849 = vmatpush.bf16.msra.mxu0 %v684
    %850 = vmatpush.bf16.msra.mxu0 %v681
    %851 = vmatpush.bf16.msra.mxu0 %v678
    %852 = vmatpush.bf16.msra.mxu0 %v675
    %853 = vmatmul.bf16.gmra.mxu0 %v169
    %v854 = vpop.f32.mrf.mxu0
    %v855 = vadd.f32 %v842, %v854
    %v856 = vpop.f32.mrf.mxu0
    %857 = vdwg.mxu0
    %858 = vmatpush.bf16.msra.mxu0 %v720
    %859 = vmatpush.bf16.msra.mxu0 %v717
    %860 = vmatpush.bf16.msra.mxu0 %v714
    %861 = vmatpush.bf16.msra.mxu0 %v711
    %862 = vmatpush.bf16.msra.mxu0 %v708
    %863 = vmatpush.bf16.msra.mxu0 %v705
    %864 = vmatpush.bf16.msra.mxu0 %v702
    %865 = vmatpush.bf16.msra.mxu0 %v699
    %866 = vmatmul.bf16.gmra.mxu0 %v170
    %v867 = vpop.f32.mrf.mxu0
    %v868 = vadd.f32 %v855, %v867
    %v869 = vpop.f32.mrf.mxu0
    %870 = vdwg.mxu0
    %871 = vmatpush.bf16.msra.mxu0 %v649
    %872 = vmatpush.bf16.msra.mxu0 %v646
    %873 = vmatpush.bf16.msra.mxu0 %v643
    %874 = vmatpush.bf16.msra.mxu0 %v640
    %875 = vmatpush.bf16.msra.mxu0 %v637
    %876 = vmatpush.bf16.msra.mxu0 %v634
    %877 = vmatpush.bf16.msra.mxu0 %v631
    %878 = vmatpush.bf16.msra.mxu0 %v628
    %879 = vmatmul.bf16.gmra.mxu0 %v167
    %v880 = vpop.f32.mrf.mxu0
    %v881 = vadd.f32 %v302, %v880
    %v882 = vpop.f32.mrf.mxu0
    %883 = vdwg.mxu0
    %884 = vmatpush.bf16.msra.mxu0 %v673
    %885 = vmatpush.bf16.msra.mxu0 %v670
    %886 = vmatpush.bf16.msra.mxu0 %v667
    %887 = vmatpush.bf16.msra.mxu0 %v664
    %888 = vmatpush.bf16.msra.mxu0 %v661
    %889 = vmatpush.bf16.msra.mxu0 %v658
    %890 = vmatpush.bf16.msra.mxu0 %v655
    %891 = vmatpush.bf16.msra.mxu0 %v652
    %892 = vmatmul.bf16.gmra.mxu0 %v168
    %v893 = vpop.f32.mrf.mxu0
    %v894 = vadd.f32 %v881, %v893
    %v895 = vpop.f32.mrf.mxu0
    %896 = vdwg.mxu0
    %897 = vmatpush.bf16.msra.mxu0 %v697
    %898 = vmatpush.bf16.msra.mxu0 %v694
    %899 = vmatpush.bf16.msra.mxu0 %v691
    %900 = vmatpush.bf16.msra.mxu0 %v688
    %901 = vmatpush.bf16.msra.mxu0 %v685
    %902 = vmatpush.bf16.msra.mxu0 %v682
    %903 = vmatpush.bf16.msra.mxu0 %v679
    %904 = vmatpush.bf16.msra.mxu0 %v676
    %905 = vmatmul.bf16.gmra.mxu0 %v169
    %v906 = vpop.f32.mrf.mxu0
    %v907 = vadd.f32 %v894, %v906
    %v908 = vpop.f32.mrf.mxu0
    %909 = vdwg.mxu0
    %910 = vmatpush.bf16.msra.mxu0 %v721
    %911 = vmatpush.bf16.msra.mxu0 %v718
    %912 = vmatpush.bf16.msra.mxu0 %v715
    %913 = vmatpush.bf16.msra.mxu0 %v712
    %914 = vmatpush.bf16.msra.mxu0 %v709
    %915 = vmatpush.bf16.msra.mxu0 %v706
    %916 = vmatpush.bf16.msra.mxu0 %v703
    %917 = vmatpush.bf16.msra.mxu0 %v700
    %918 = vmatmul.bf16.gmra.mxu0 %v170
    %v919 = vpop.f32.mrf.mxu0
    %v920 = vadd.f32 %v907, %v919
    %v921 = vpop.f32.mrf.mxu0
    %922 = vdwg.mxu0
    %923 = vmatpush.bf16.msra.mxu0 %v650
    %924 = vmatpush.bf16.msra.mxu0 %v647
    %925 = vmatpush.bf16.msra.mxu0 %v644
    %926 = vmatpush.bf16.msra.mxu0 %v641
    %927 = vmatpush.bf16.msra.mxu0 %v638
    %928 = vmatpush.bf16.msra.mxu0 %v635
    %929 = vmatpush.bf16.msra.mxu0 %v632
    %930 = vmatpush.bf16.msra.mxu0 %v629
    %931 = vmatmul.bf16.gmra.mxu0 %v167
    %v932 = vpop.f32.mrf.mxu0
    %v933 = vadd.f32 %v303, %v932
    %v934 = vpop.f32.mrf.mxu0
    %935 = vdwg.mxu0
    %936 = vmatpush.bf16.msra.mxu0 %v674
    %937 = vmatpush.bf16.msra.mxu0 %v671
    %938 = vmatpush.bf16.msra.mxu0 %v668
    %939 = vmatpush.bf16.msra.mxu0 %v665
    %940 = vmatpush.bf16.msra.mxu0 %v662
    %941 = vmatpush.bf16.msra.mxu0 %v659
    %942 = vmatpush.bf16.msra.mxu0 %v656
    %943 = vmatpush.bf16.msra.mxu0 %v653
    %944 = vmatmul.bf16.gmra.mxu0 %v168
    %v945 = vpop.f32.mrf.mxu0
    %v946 = vadd.f32 %v933, %v945
    %v947 = vpop.f32.mrf.mxu0
    %948 = vdwg.mxu0
    %949 = vmatpush.bf16.msra.mxu0 %v698
    %950 = vmatpush.bf16.msra.mxu0 %v695
    %951 = vmatpush.bf16.msra.mxu0 %v692
    %952 = vmatpush.bf16.msra.mxu0 %v689
    %953 = vmatpush.bf16.msra.mxu0 %v686
    %954 = vmatpush.bf16.msra.mxu0 %v683
    %955 = vmatpush.bf16.msra.mxu0 %v680
    %956 = vmatpush.bf16.msra.mxu0 %v677
    %957 = vmatmul.bf16.gmra.mxu0 %v169
    %v958 = vpop.f32.mrf.mxu0
    %v959 = vadd.f32 %v946, %v958
    %v960 = vpop.f32.mrf.mxu0
    %961 = vdwg.mxu0
    %962 = vmatpush.bf16.msra.mxu0 %v722
    %963 = vmatpush.bf16.msra.mxu0 %v719
    %964 = vmatpush.bf16.msra.mxu0 %v716
    %965 = vmatpush.bf16.msra.mxu0 %v713
    %966 = vmatpush.bf16.msra.mxu0 %v710
    %967 = vmatpush.bf16.msra.mxu0 %v707
    %968 = vmatpush.bf16.msra.mxu0 %v704
    %969 = vmatpush.bf16.msra.mxu0 %v701
    %970 = vmatmul.bf16.gmra.mxu0 %v170
    %v971 = vpop.f32.mrf.mxu0
    %v972 = vadd.f32 %v959, %v971
    %v973 = vpop.f32.mrf.mxu0
    %974 = vdwg.mxu0
    %v975 = vmax.f32 %v868, 0.0
    %v976 = vmax.f32 %v920, 0.0
    %v977 = vmax.f32 %v972, 0.0
    %v978 = vpack.c.bf16 %v975, %v975
    %v979 = vpack.c.bf16 %v976, %v976
    %v980 = vpack.c.bf16 %v977, %v977
    %v981 = vld [vmem:[%s6] sm:$0xf]
    %v982 = vld [vmem:[%s6 + $0x4] sm:$0xf]
    %v983 = vld [vmem:[%s6 + $0x8] sm:$0xf]
    %v984 = vld [vmem:[%s6 + $0xc] sm:$0xf]
    %v985 = vld [vmem:[%s6 + $0x10] sm:$0xf]
    %v986 = vld [vmem:[%s6 + $0x14] sm:$0xf]
    %v987 = vld [vmem:[%s6 + $0x18] sm:$0xf]
    %v988 = vld [vmem:[%s6 + $0x1c] sm:$0xf]
    %v989 = vld [vmem:[%s6 + $0x20] sm:$0xf]
    %v990 = vld [vmem:[%s6 + $0x24] sm:$0xf]
    %v991 = vld [vmem:[%s6 + $0x28] sm:$0xf]
    %v992 = vld [vmem:[%s6 + $0x2c] sm:$0xf]
    %v993 = vld [vmem:[%s6 + $0x30] sm:$0xf]
    %v994 = vld [vmem:[%s6 + $0x34] sm:$0xf]
    %v995 = vld [vmem:[%s6 + $0x38] sm:$0xf]
    %v996 = vld [vmem:[%s6 + $0x3c] sm:$0xf]
    %v997 = vld [vmem:[%s6 + $0x40] sm:$0xf]
    %v998 = vld [vmem:[%s6 + $0x44] sm:$0xf]
    %v999 = vld [vmem:[%s6 + $0x48] sm:$0xf]
    %v1000 = vld [vmem:[%s6 + $0x4c] sm:$0xf]
    %v1001 = vld [vmem:[%s6 + $0x50] sm:$0xf]
    %v1002 = vld [vmem:[%s6 + $0x54] sm:$0xf]
    %v1003 = vld [vmem:[%s6 + $0x58] sm:$0xf]
    %v1004 = vld [vmem:[%s6 + $0x5c] sm:$0xf]
    %v1005 = vld [vmem:[%s6 + $0x60] sm:$0xf]
    %v1006 = vld [vmem:[%s6 + $0x64] sm:$0xf]
    %v1007 = vld [vmem:[%s6 + $0x68] sm:$0xf]
    %v1008 = vld [vmem:[%s6 + $0x6c] sm:$0xf]
    %v1009 = vld [vmem:[%s6 + $0x70] sm:$0xf]
    %v1010 = vld [vmem:[%s6 + $0x74] sm:$0xf]
    %v1011 = vld [vmem:[%s6 + $0x78] sm:$0xf]
    %v1012 = vld [vmem:[%s6 + $0x7c] sm:$0xf]
    %v1013 = vld [vmem:[%s6 + $0x80] sm:$0xf]
    %v1014 = vld [vmem:[%s6 + $0x84] sm:$0xf]
    %v1015 = vld [vmem:[%s6 + $0x88] sm:$0xf]
    %v1016 = vld [vmem:[%s6 + $0x8c] sm:$0xf]
    %v1017 = vld [vmem:[%s6 + $0x90] sm:$0xf]
    %v1018 = vld [vmem:[%s6 + $0x94] sm:$0xf]
    %v1019 = vld [vmem:[%s6 + $0x98] sm:$0xf]
    %v1020 = vld [vmem:[%s6 + $0x9c] sm:$0xf]
    %v1021 = vld [vmem:[%s6 + $0xa0] sm:$0xf]
    %v1022 = vld [vmem:[%s6 + $0xa4] sm:$0xf]
    %v1023 = vld [vmem:[%s6 + $0xa8] sm:$0xf]
    %v1024 = vld [vmem:[%s6 + $0xac] sm:$0xf]
    %v1025 = vld [vmem:[%s6 + $0xb0] sm:$0xf]
    %v1026 = vld [vmem:[%s6 + $0xb4] sm:$0xf]
    %v1027 = vld [vmem:[%s6 + $0xb8] sm:$0xf]
    %v1028 = vld [vmem:[%s6 + $0xbc] sm:$0xf]
    %v1029 = vld [vmem:[%s7] sm:$0x1]
    %v1031 = vperm.slane %v1029, 0
    %v1081 = vunpack.c.l.b16 %v981
    %v1082 = vunpack.c.l.b16 %v982
    %v1083 = vunpack.c.l.b16 %v983
    %v1084 = vunpack.c.l.b16 %v984
    %v1085 = vunpack.c.l.b16 %v985
    %v1086 = vunpack.c.l.b16 %v986
    %v1087 = vunpack.c.l.b16 %v987
    %v1088 = vunpack.c.l.b16 %v988
    %v1089 = vunpack.c.l.b16 %v989
    %v1090 = vunpack.c.l.b16 %v990
    %v1091 = vunpack.c.l.b16 %v991
    %v1092 = vunpack.c.l.b16 %v992
    %v1093 = vunpack.c.l.b16 %v993
    %v1094 = vunpack.c.l.b16 %v994
    %v1095 = vunpack.c.l.b16 %v995
    %v1096 = vunpack.c.l.b16 %v996
    %v1097 = vunpack.c.l.b16 %v997
    %v1098 = vunpack.c.l.b16 %v998
    %v1099 = vunpack.c.l.b16 %v999
    %v1100 = vunpack.c.l.b16 %v1000
    %v1101 = vunpack.c.l.b16 %v1001
    %v1102 = vunpack.c.l.b16 %v1002
    %v1103 = vunpack.c.l.b16 %v1003
    %v1104 = vunpack.c.l.b16 %v1004
    %v1105 = vunpack.c.l.b16 %v1005
    %v1106 = vunpack.c.l.b16 %v1006
    %v1107 = vunpack.c.l.b16 %v1007
    %v1108 = vunpack.c.l.b16 %v1008
    %v1109 = vunpack.c.l.b16 %v1009
    %v1110 = vunpack.c.l.b16 %v1010
    %v1111 = vunpack.c.l.b16 %v1011
    %v1112 = vunpack.c.l.b16 %v1012
    %v1113 = vunpack.c.l.b16 %v1013
    %v1114 = vunpack.c.l.b16 %v1014
    %v1115 = vunpack.c.l.b16 %v1015
    %v1116 = vunpack.c.l.b16 %v1016
    %v1117 = vunpack.c.l.b16 %v1017
    %v1118 = vunpack.c.l.b16 %v1018
    %v1119 = vunpack.c.l.b16 %v1019
    %v1120 = vunpack.c.l.b16 %v1020
    %v1121 = vunpack.c.l.b16 %v1021
    %v1122 = vunpack.c.l.b16 %v1022
    %v1123 = vunpack.c.l.b16 %v1023
    %v1124 = vunpack.c.l.b16 %v1024
    %v1125 = vunpack.c.l.b16 %v1025
    %v1126 = vunpack.c.l.b16 %v1026
    %v1127 = vunpack.c.l.b16 %v1027
    %v1128 = vunpack.c.l.b16 %v1028
    %v1129 = vpack.c.b16 %v1082, %v1081
    %v1130 = vpack.c.b16 %v1084, %v1083
    %v1131 = vpack.c.b16 %v1086, %v1085
    %v1132 = vpack.c.b16 %v1088, %v1087
    %v1133 = vpack.c.b16 %v1090, %v1089
    %v1134 = vpack.c.b16 %v1092, %v1091
    %v1135 = vpack.c.b16 %v1094, %v1093
    %v1136 = vpack.c.b16 %v1096, %v1095
    %v1137 = vpack.c.b16 %v1098, %v1097
    %v1138 = vpack.c.b16 %v1100, %v1099
    %v1139 = vpack.c.b16 %v1102, %v1101
    %v1140 = vpack.c.b16 %v1104, %v1103
    %v1141 = vpack.c.b16 %v1106, %v1105
    %v1142 = vpack.c.b16 %v1108, %v1107
    %v1143 = vpack.c.b16 %v1110, %v1109
    %v1144 = vpack.c.b16 %v1112, %v1111
    %v1145 = vpack.c.b16 %v1114, %v1113
    %v1146 = vpack.c.b16 %v1116, %v1115
    %v1147 = vpack.c.b16 %v1118, %v1117
    %v1148 = vpack.c.b16 %v1120, %v1119
    %v1149 = vpack.c.b16 %v1122, %v1121
    %v1150 = vpack.c.b16 %v1124, %v1123
    %v1151 = vpack.c.b16 %v1126, %v1125
    %v1152 = vpack.c.b16 %v1128, %v1127
    %1177 = vmatpush.bf16.msra.mxu0 %v1136
    %1178 = vmatpush.bf16.msra.mxu0 %v1135
    %1179 = vmatpush.bf16.msra.mxu0 %v1134
    %1180 = vmatpush.bf16.msra.mxu0 %v1133
    %1181 = vmatpush.bf16.msra.mxu0 %v1132
    %1182 = vmatpush.bf16.msra.mxu0 %v1131
    %1183 = vmatpush.bf16.msra.mxu0 %v1130
    %1184 = vmatpush.bf16.msra.mxu0 %v1129
    %1185 = vmatmul.bf16.gmra.mxu0 %v978
    %v1186 = vpop.f32.mrf.mxu0
    %v1187 = vadd.f32 %v1031, %v1186
    %v1188 = vpop.f32.mrf.mxu0
    %1189 = vdwg.mxu0
    %1190 = vmatpush.bf16.msra.mxu0 %v1144
    %1191 = vmatpush.bf16.msra.mxu0 %v1143
    %1192 = vmatpush.bf16.msra.mxu0 %v1142
    %1193 = vmatpush.bf16.msra.mxu0 %v1141
    %1194 = vmatpush.bf16.msra.mxu0 %v1140
    %1195 = vmatpush.bf16.msra.mxu0 %v1139
    %1196 = vmatpush.bf16.msra.mxu0 %v1138
    %1197 = vmatpush.bf16.msra.mxu0 %v1137
    %1198 = vmatmul.bf16.gmra.mxu0 %v979
    %v1199 = vpop.f32.mrf.mxu0
    %v1200 = vadd.f32 %v1187, %v1199
    %v1201 = vpop.f32.mrf.mxu0
    %1202 = vdwg.mxu0
    %1203 = vmatpush.bf16.msra.mxu0 %v1152
    %1204 = vmatpush.bf16.msra.mxu0 %v1151
    %1205 = vmatpush.bf16.msra.mxu0 %v1150
    %1206 = vmatpush.bf16.msra.mxu0 %v1149
    %1207 = vmatpush.bf16.msra.mxu0 %v1148
    %1208 = vmatpush.bf16.msra.mxu0 %v1147
    %1209 = vmatpush.bf16.msra.mxu0 %v1146
    %1210 = vmatpush.bf16.msra.mxu0 %v1145
    %1211 = vmatmul.bf16.gmra.mxu0 %v980
    %v1212 = vpop.f32.mrf.mxu0
    %v1213 = vadd.f32 %v1200, %v1212
    %v1214 = vpop.f32.mrf.mxu0
    %1215 = vdwg.mxu0
    %s1216 = sld [smem:[#allocation2]]
    %v1217 = vtanh.pop %v1213
    %v1218 = vstv %s1216
    %v1219 = vmul.f32 %v1218, %v1217
    %vm1220 = vcmask 64512
    %1221 = vst.msk [vmem:[#allocation6] sm:$0xff] %vm1220, %v1219
    // Predicated region
    $region38: #{tpu_custom_call.1} parent=1 // pred_check
      _
    $region39: #{tpu_custom_call.1} parent=1 // pred_check_branch
      %1223 = sbr.rel (0) target = $region41
    $region40: #{tpu_custom_call.1} parent=1 // pred_region
      %1225 = vsyncadd [#allocation5], 0
      %s1227 = sshll.u32 [#allocation6], 4
      %s1228 = int_to_ptr.vmem [resolvable:$true] %s1227
      %s1229 = sshll.u32 %s8, 4
      %s1230 = int_to_ptr.hbm [resolvable:$true] %s1229
      %1232 = dma.vmem_to_hbm [thread:$0]  %s1228, 128, %s1230, [#allocation5]
    $region41: #{tpu_custom_call.1} parent=1 // pred_fallthru
      _
    // Predicated region
    $region42: #{tpu_custom_call.1} parent=1 // pred_check
      _
    $region43: #{tpu_custom_call.1} parent=1 // pred_check_branch
      %1234 = sbr.rel (0) target = $region45
    $region44: #{tpu_custom_call.1} parent=1 // pred_region
      %1236 = dma.done [#allocation5], 128
    $region45: #{tpu_custom_call.1} parent=1 // pred_fallthru
      _
    %1237 = vsyncpa [#allocation4], 1
    %1238 = vsyncpa [#allocation5], 1

</llo_original>
